<compile_context>
chip_gen: v7x
topology: tpu7x:2x2x1
jax: 0.10.0
libtpu: 0.0.40
codegen_flags: <defaults>
</compile_context>

<pallas_src>
import math
import functools

import numpy as np
import jax
import jax.numpy as jnp
from jax.experimental import pallas as pl
from jax.experimental.pallas import tpu as pltpu


def _make_blur_taps(k1d, factor=2):
    k = np.array(k1d, dtype=np.float32)
    k = np.outer(k, k)
    k = k / k.sum()
    k = k * (factor ** 2)
    # upfirdn2d correlates with the flipped kernel (no-op: symmetric).
    return k[::-1, ::-1].copy()


# ---------------------------------------------------------------------------
# Kernel 1: modulated 1x1 conv (ToRGB conv) + bias, on the flattened spatial
# axis.  Style modulation is hoisted to the wrapper (tiny (B,3,C) tensor).
# ---------------------------------------------------------------------------
def modconv_kernel(w_ref, x_ref, bias_ref, o_ref):
    # w_ref:    (1, 3, C)      per-batch modulated conv weight (resident)
    # x_ref:    (1, C, T_HW)   input feature tile (spatial flattened)
    # bias_ref: (3, 1)         ToRGB bias
    # o_ref:    (1, 3, T_HW)
    w = w_ref[0]                                                    # (3, C)
    out = jnp.dot(w, x_ref[0], preferred_element_type=jnp.float32)  # (3, T_HW)
    o_ref[0] = out + bias_ref[...]


# ---------------------------------------------------------------------------
# Kernel 2: 2x-upsampling 4x4 FIR of skip + residual add with the conv output.
#
# skd_ref holds the nearest-2x expanded, 1-padded (half-res) skip:
#   skd[m, d] = skip_pad[m // 2, d // 2],  shape (3, H+4, W+4)
# With that layout the separable [1,3,3,1]/4 upsampling filter reduces, for
# every output pixel, to
#   col pass: g    = 0.75*skd[.., x+2] + 0.25*(x even ? skd[.., x] : skd[.., x+4])
#   row pass: blur = 0.75*g[y+2, ..]   + 0.25*(y even ? g[y, ..]   : g[y+4, ..])
# (verified against upfirdn2d(up=2, pad=(2,1), kernel=make_kernel([1,3,3,1])*4)).
# ---------------------------------------------------------------------------
def blur_add_kernel(conv_ref, skd_ref, o_ref, *, tile_h, w_out):
    # conv_ref: (1, 3, TILE_H, W)
    # skd_ref:  (1, 3, H+4, W+4)   resident per batch
    # o_ref:    (1, 3, TILE_H, W)
    t = pl.program_id(1)
    row0 = t * tile_h
    if tile_h % 8 == 0:
        row0 = pl.multiple_of(row0, 8)
    sk = skd_ref[0, :, pl.ds(row0, tile_h + 4), :]        # (3, TILE_H+4, W+4)

    # Horizontal (column) pass: even-offset slices only, parity select on lanes.
    s0 = sk[:, :, 0:w_out]
    s2 = sk[:, :, 2:2 + w_out]
    s4 = sk[:, :, 4:4 + w_out]
    col = jax.lax.broadcasted_iota(jnp.int32, s0.shape, 2)
    g = 0.75 * s2 + 0.25 * jnp.where((col & 1) == 0, s0, s4)  # (3, TILE_H+4, W)

    # Vertical (row) pass: same structure on the sublane axis.  Tile row
    # parity == global row parity because tile_h is even.
    r0 = g[:, 0:tile_h, :]
    r2 = g[:, 2:2 + tile_h, :]
    r4 = g[:, 4:4 + tile_h, :]
    row = jax.lax.broadcasted_iota(jnp.int32, r0.shape, 1)
    blur = 0.75 * r2 + 0.25 * jnp.where((row & 1) == 0, r0, r4)

    o_ref[0] = conv_ref[0] + blur


# ---------------------------------------------------------------------------
# Wrapper
# ---------------------------------------------------------------------------
def _vmem_block_bytes(shape, itemsize=4):
    """Approximate VMEM footprint of one block (last dims padded to 8x128)."""
    s = list(shape)
    if len(s) >= 1:
        s[-1] = ((s[-1] + 127) // 128) * 128
    if len(s) >= 2:
        s[-2] = ((s[-2] + 7) // 8) * 8
    n = 1
    for d in s:
        n *= d
    return n * itemsize


def _vmem_limit(nbytes):
    # computed need + 50% headroom, clamped to a sane [32 MiB, 96 MiB] range.
    return int(max(32 << 20, min(96 << 20, int(nbytes * 1.5))))


def to_rgb_forward(x, style, skip, params, *, tile_hw=None, tile_h=None):
    B, C, H, W = x.shape
    S = style.shape[1]
    Bs, Cs, Hs, Ws = skip.shape
    assert Bs == B and Cs == 3 and H == 2 * Hs and W == 2 * Ws
    HW = H * W

    mod_scale = 1.0 / math.sqrt(S)     # EqualLinear: 1/sqrt(in_dim) * lr_mul
    conv_scale = 1.0 / math.sqrt(C)    # ModulatedConv2d: 1/sqrt(C * k^2), k=1

    # ---- hoisted style modulation: tiny (B,3,C), computed once (not per tile)
    mod = style @ (params["mod_weight"] * mod_scale).T + params["mod_bias"]  # (B, C)
    w = conv_scale * params["conv_weight"][None, :, :] * mod[:, None, :]     # (B, 3, C)
    w = w.astype(jnp.float32)
    bias = params["bias"].reshape(3, 1).astype(jnp.float32)

    # ---- generation-aware-ish tile selection (keeps blocks well under VMEM,
    #      TILE_HW a multiple of 128, TILE_H a multiple of 8, both divisors).
    if tile_hw is None:
        tile_hw = HW
        for cand in (8192, 4096, 2048, 1024, 512, 256, 128):
            if HW % cand == 0 and C * cand * 4 <= (4 << 20):
                tile_hw = cand
                break
    if tile_h is None:
        tile_h = H
        for cand in (256, 128, 64, 32, 16, 8):
            if H % cand == 0 and 3 * cand * W * 4 <= (2 << 20):
                tile_h = cand
                break
    assert HW % tile_hw == 0 and (tile_hw % 128 == 0 or tile_hw == HW)
    assert H % tile_h == 0 and tile_h % 2 == 0
    assert tile_h % 8 == 0 or tile_h == H

    # ---- Kernel 1: modulated 1x1 conv, streamed over HW tiles -------------
    x_flat = x.reshape(B, C, HW)           # free (contiguous) reshape
    n_hw = HW // tile_hw
    vmem1 = _vmem_limit(
        2 * _vmem_block_bytes((1, C, tile_hw))
        + 2 * _vmem_block_bytes((1, 3, tile_hw))
        + 2 * _vmem_block_bytes((1, 3, C))
        + 2 * _vmem_block_bytes((3, 1)))
    conv_out = pl.pallas_call(
        modconv_kernel,
        out_shape=jax.ShapeDtypeStruct((B, 3, HW), jnp.float32),
        grid_spec=pltpu.PrefetchScalarGridSpec(
            num_scalar_prefetch=0,
            grid=(B, n_hw),
            in_specs=[
                pl.BlockSpec((1, 3, C), lambda b, t: (b, 0, 0)),
                pl.BlockSpec((1, C, tile_hw), lambda b, t: (b, 0, t)),
                pl.BlockSpec((3, 1), lambda b, t: (0, 0)),
            ],
            out_specs=pl.BlockSpec((1, 3, tile_hw), lambda b, t: (b, 0, t)),
        ),
        compiler_params=pltpu.CompilerParams(
            dimension_semantics=("parallel", "parallel"),
            vmem_limit_bytes=vmem1),
    )(w, x_flat, bias)
    conv_out = conv_out.reshape(B, 3, H, W)   # free (contiguous) reshape

    # ---- nearest-2x expanded, padded skip (pure data movement on the tiny
    #      half-res tensor; all FIR arithmetic runs inside the kernel).
    skip_pad = jnp.pad(skip.astype(jnp.float32),
                       ((0, 0), (0, 0), (1, 1), (1, 1)))          # (B,3,Hs+2,Ws+2)
    skd2 = jnp.repeat(jnp.repeat(skip_pad, 2, axis=2), 2, axis=3)  # (B,3,H+4,W+4)

    # ---- Kernel 2: upsampling FIR + residual add, row-tiled ----------------
    n_t = H // tile_h
    vmem2 = _vmem_limit(
        2 * _vmem_block_bytes((1, 3, H + 4, W + 4))
        + 4 * _vmem_block_bytes((1, 3, tile_h, W)))
    out = pl.pallas_call(
        functools.partial(blur_add_kernel, tile_h=tile_h, w_out=W),
        out_shape=jax.ShapeDtypeStruct((B, 3, H, W), jnp.float32),
        grid_spec=pltpu.PrefetchScalarGridSpec(
            num_scalar_prefetch=0,
            grid=(B, n_t),
            in_specs=[
                pl.BlockSpec((1, 3, tile_h, W), lambda b, t: (b, 0, t, 0)),
                # resident per batch (index map ignores t -> re-fetched only
                # when the batch index changes)
                pl.BlockSpec((1, 3, H + 4, W + 4), lambda b, t: (b, 0, 0, 0)),
            ],
            out_specs=pl.BlockSpec((1, 3, tile_h, W), lambda b, t: (b, 0, t, 0)),
        ),
        compiler_params=pltpu.CompilerParams(
            dimension_semantics=("parallel", "parallel"),
            vmem_limit_bytes=vmem2),
    )(conv_out, skd2)
    return out


# ---------------------------------------------------------------------------
# Pure-JAX reference (for validation)
# ---------------------------------------------------------------------------
def to_rgb_reference(x, style, skip, params):
    B, C, H, W = x.shape
    S = style.shape[1]
    mod = style @ (params["mod_weight"] * (1.0 / math.sqrt(S))).T \
        + params["mod_bias"]                                     # (B, C)
    w = (1.0 / math.sqrt(C)) * params["conv_weight"][None] * mod[:, None, :]
    conv = jnp.einsum("boc,bchw->bohw", w, x) + params["bias"].reshape(1, 3, 1, 1)

    Bs, Cs, Hs, Ws = skip.shape
    up = jnp.zeros((Bs, Cs, 2 * Hs, 2 * Ws), skip.dtype)
    up = up.at[:, :, ::2, ::2].set(skip)
    up = jnp.pad(up, ((0, 0), (0, 0), (2, 1), (2, 1)))
    taps = jnp.asarray(_make_blur_taps([1, 3, 3, 1], factor=2))
    blur = jnp.zeros((Bs, Cs, 2 * Hs, 2 * Ws), jnp.float32)
    for i in range(4):
        for j in range(4):
            blur = blur + taps[i, j] * up[:, :, i:i + 2 * Hs, j:j + 2 * Ws]
    return conv + blur


if __name__ == "__main__":
    B, C, S = 2, 4, 32          # batch, in_channel, style_dim
    H = W = 16                  # spatial size of `input`
    Hs = Ws = H // 2            # `skip` is half resolution (it gets upsampled)

    key = jax.random.PRNGKey(0)
    kx, ks, kskip, kmw, kcw = jax.random.split(key, 5)

    x = jax.random.normal(kx, (B, C, H, W), jnp.float32)
    style = jax.random.normal(ks, (B, S), jnp.float32)
    skip = jax.random.normal(kskip, (B, 3, Hs, Ws), jnp.float32)

    params = {
        # EqualLinear(style_dim, in_channel, bias_init=1): weight (C, S), bias=1
        "mod_weight": jax.random.normal(kmw, (C, S), jnp.float32),
        "mod_bias": jnp.ones((C,), jnp.float32),
        # ModulatedConv2d weight (1, 3, C, 1, 1) -> squeezed to (3, C)
        "conv_weight": jax.random.normal(kcw, (3, C), jnp.float32),
        # ToRGB bias (1, 3, 1, 1) zeros
        "bias": jnp.zeros((1, 3, 1, 1), jnp.float32),
    }

    # Small tiles passed explicitly so the test exercises multi-tile grids
    # (HW=256 -> 2 spatial tiles, H=16 -> 2 row tiles, B=2 batches).
    out = to_rgb_forward(x, style, skip, params, tile_hw=128, tile_h=8)
    out = jax.block_until_ready(out)

    ref = jax.block_until_ready(to_rgb_reference(x, style, skip, params))
    assert out.shape == (B, 3, H, W)
    np.testing.assert_allclose(np.asarray(out), np.asarray(ref),
                               rtol=1e-3, atol=1e-3)
    print("KERNEL_OK")
</pallas_src>

<mosaic_0001>
module attributes {stable_mosaic.version = 11 : i64} {
  func.func @modconv_kernel(%arg0: i32, %arg1: i32, %arg2: memref<1x3x4xf32, #tpu.memory_space<vmem>>, %arg3: memref<1x4x128xf32, #tpu.memory_space<vmem>>, %arg4: memref<3x1xf32, #tpu.memory_space<vmem>>, %arg5: memref<1x3x128xf32, #tpu.memory_space<vmem>>) attributes {dimension_semantics = [#tpu.dimension_semantics<parallel>, #tpu.dimension_semantics<parallel>], iteration_bounds = array<i64: 2, 2>, scalar_prefetch = 0 : i64, scratch_operands = 0 : i64, tpu.core_type = #tpu.core_type<tc>, window_params = [{transform_indices = @transform_0, window_bounds = array<i64: 1, 3, 4>}, {transform_indices = @transform_1, window_bounds = array<i64: 1, 4, 128>}, {pipeline_mode = #tpu.pipeline_mode<synchronous>, transform_indices = @transform_2, window_bounds = array<i64: 3, 1>}, {transform_indices = @transform_3, window_bounds = array<i64: 1, 3, 128>}]} {
    %c0 = arith.constant 0 : index
    %c0_0 = arith.constant 0 : index
    %c0_1 = arith.constant 0 : index
    %0 = vector.load %arg2[%c0, %c0_0, %c0_1] : memref<1x3x4xf32, #tpu.memory_space<vmem>>, vector<1x3x4xf32>
    %1 = vector.shape_cast %0 : vector<1x3x4xf32> to vector<3x4xf32>
    %c0_2 = arith.constant 0 : index
    %c0_3 = arith.constant 0 : index
    %c0_4 = arith.constant 0 : index
    %2 = vector.load %arg3[%c0_2, %c0_3, %c0_4] : memref<1x4x128xf32, #tpu.memory_space<vmem>>, vector<1x4x128xf32>
    %3 = vector.shape_cast %2 : vector<1x4x128xf32> to vector<4x128xf32>
    %cst = arith.constant dense<0.000000e+00> : vector<3x128xf32>
    %4 = tpu.matmul %1, %3, %cst {dimension_numbers = #tpu.dot_dimension_numbers<[1], [0], [0], [1], [0, 0, 1, 1], [], []>} : vector<3x4xf32>, vector<4x128xf32>, vector<3x128xf32> -> vector<3x128xf32>
    %c0_5 = arith.constant 0 : index
    %c0_6 = arith.constant 0 : index
    %5 = vector.load %arg4[%c0_5, %c0_6] : memref<3x1xf32, #tpu.memory_space<vmem>>, vector<3x1xf32>
    %6 = vector.broadcast %5 : vector<3x1xf32> to vector<3x128xf32>
    %7 = arith.addf %4, %6 : vector<3x128xf32>
    %c0_7 = arith.constant 0 : index
    %c0_8 = arith.constant 0 : index
    %c0_9 = arith.constant 0 : index
    %8 = vector.load %arg5[%c0_7, %c0_8, %c0_9] : memref<1x3x128xf32, #tpu.memory_space<vmem>>, vector<1x3x128xf32>
    %9 = vector.shape_cast %8 : vector<1x3x128xf32> to vector<3x128xf32>
    %10 = vector.shape_cast %7 : vector<3x128xf32> to vector<1x3x128xf32>
    tpu.vector_store %arg5[%c0_7, %c0_8, %c0_9], %10 {strides = array<i32>} : memref<1x3x128xf32, #tpu.memory_space<vmem>>, vector<1x3x128xf32>,
    return
  }
  func.func @transform_0(%arg0: i32, %arg1: i32) -> (i32, i32, i32) {
    %c0_i32 = arith.constant 0 : i32
    %c0_i32_0 = arith.constant 0 : i32
    %c0_i32_1 = arith.constant 0 : i32
    return %arg0, %c0_i32, %c0_i32_0 : i32, i32, i32
  }
  func.func @transform_1(%arg0: i32, %arg1: i32) -> (i32, i32, i32) {
    %c0_i32 = arith.constant 0 : i32
    %c0_i32_0 = arith.constant 0 : i32
    return %arg0, %c0_i32, %arg1 : i32, i32, i32
  }
  func.func @transform_2(%arg0: i32, %arg1: i32) -> (i32, i32) {
    %c0_i32 = arith.constant 0 : i32
    %c0_i32_0 = arith.constant 0 : i32
    %c0_i32_1 = arith.constant 0 : i32
    return %c0_i32, %c0_i32_0 : i32, i32
  }
  func.func @transform_3(%arg0: i32, %arg1: i32) -> (i32, i32, i32) {
    %c0_i32 = arith.constant 0 : i32
    %c0_i32_0 = arith.constant 0 : i32
    return %arg0, %c0_i32, %arg1 : i32, i32, i32
  }
}

</mosaic_0001>

<llo_original>
// kernel: tpu_custom_call.1
$region0: #{tpu_custom_call.1}
  #allocation0 [shape = 'u32[]', space=smem, size = 0x4, offset = 0x4, fixed_abs, tag = 'smem constant byte address 0x4 - core index']
  #allocation1 [shape = 'u32[144,128]{1,0:T(1,128)}', space=vmem, size = 0x12000, scoped, tag = 'internal scratch']
  %s0 = inlined_call_operand.vmem [shape: f32[2,3,4], index: 0, kind: input, shape index: {}]
  %s1 = inlined_call_operand.vmem [shape: f32[2,4,256], index: 1, kind: input, shape index: {}]
  %s2 = inlined_call_operand.vmem [shape: f32[3,1], index: 2, kind: input, shape index: {}]
  %s3 = inlined_call_operand.vmem [shape: f32[2,3,256], index: 3, kind: output, shape index: {}]
  %s4 = sld [smem:[#allocation0]]
  $region45: #{tpu_custom_call.1} parent=0
    _
  %s6 = ssub.s32 1, %s4
  %s7 = scalar_select 0, %s6, %s4
  loop: start=0, step=1, limit=6
  $region2: #{tpu_custom_call.1} parent=0 // loop_pre_header
    _
  $region3: #{tpu_custom_call.1} parent=0 // loop_header
    %s9 = sphi 0, %s13
    %p10 = scmp.ge.s32.totalorder %s9, 6
    %s16 = sphi 0, %s28
    %s17 = sphi 0, %s24
    %s18 = sphi 0, %s16
    %s19 = sphi 0, %s17
    %s20 = sphi 0, %s18
    %s21 = sphi 0, %s19
    %s31 = sphi 0, %s33
    %s34 = sphi 0, %s31
    %s35 = sphi 0, %s34
    %s51 = sphi 0, %s35
    %s59 = sphi 0, %s61
    %s62 = sphi 0, %s59
    %s63 = sphi 0, %s62
    %s79 = sphi 0, %s63
    %s83 = sphi 0, %s83
    %s85 = sphi 0, %s83
    %s86 = sphi 0, %s85
    %s100 = sphi 0, %s86
    %s108 = sphi 0, %s110
    %s111 = sphi 0, %s108
    %s112 = sphi 0, %s111
    %s128 = sphi 0, %s112
  $region4: #{tpu_custom_call.1} parent=0 // loop_header_branch
    %12 = sbr.rel (%p10) target = $region8
  $region5: #{tpu_custom_call.1} parent=0 // loop_body
    %s14 = ssub.s32 %s9, 1
    %s15 = ssub.s32 %s9, 2
    %s22 = sadd.s32 1, %s17
    %p23 = scmp.ge.s32.totalorder %s22, 2
    %s24 = scalar_select %p23, 0, %s22
    %s25 = sadd.s32 1, %s16
    %s26 = scalar_select %p23, %s25, %s16
    %p27 = scmp.ge.s32.totalorder %s26, 2
    %s28 = scalar_select %p27, 0, %s26
    %s29 = ssub.s32 %s16, %s28
    %p30 = scmp.eq.s32.totalorder %s29, 0
    %s32 = sadd.s32 %s31, 1
    %s33 = scalar_select %p30, %s31, %s32
    %p36 = pneg %p30
    %p37 = scmp.eq.s32.totalorder %s9, 3
    %p38 = por %p36, %p37
    %p39 = scmp.ne.s32.totalorder %s31, %s34
    %p40 = scmp.eq.s32.totalorder %s9, 0
    %p41 = por %p39, %p40
    %p42 = scmp.ne.s32.totalorder %s31, %s34
    %p43 = scmp.eq.s32.totalorder %s14, 3
    %p44 = por %p42, %p43
    %p45 = scmp.ne.s32.totalorder %s34, %s35
    %p46 = scmp.eq.s32.totalorder %s14, 0
    %p47 = por %p45, %p46
    %p48 = scmp.ne.s32.totalorder %s34, %s35
    %p49 = scmp.eq.s32.totalorder %s15, 3
    %p50 = por %p48, %p49
    %p52 = scmp.ne.s32.totalorder %s35, %s51
    %p53 = scmp.eq.s32.totalorder %s15, 0
    %p54 = por %p52, %p53
    %s55 = ssub.s32 %s16, %s28
    %s56 = ssub.s32 %s17, %s24
    %s57 = sor.u32 %s55, %s56
    %p58 = scmp.eq.s32.totalorder %s57, 0
    %s60 = sadd.s32 %s59, 1
    %s61 = scalar_select %p58, %s59, %s60
    %p64 = pneg %p58
    %p65 = scmp.eq.s32.totalorder %s9, 3
    %p66 = por %p64, %p65
    %p67 = scmp.ne.s32.totalorder %s59, %s62
    %p68 = scmp.eq.s32.totalorder %s9, 0
    %p69 = por %p67, %p68
    %p70 = scmp.ne.s32.totalorder %s59, %s62
    %p71 = scmp.eq.s32.totalorder %s14, 3
    %p72 = por %p70, %p71
    %p73 = scmp.ne.s32.totalorder %s62, %s63
    %p74 = scmp.eq.s32.totalorder %s14, 0
    %p75 = por %p73, %p74
    %p76 = scmp.ne.s32.totalorder %s62, %s63
    %p77 = scmp.eq.s32.totalorder %s15, 3
    %p78 = por %p76, %p77
    %p80 = scmp.ne.s32.totalorder %s63, %s79
    %p81 = scmp.eq.s32.totalorder %s15, 0
    %p82 = por %p80, %p81
    %s84 = sadd.s32 %s83, 1
    %p87 = scmp.eq.s32.totalorder %s9, 3
    %p88 = scmp.ne.s32.totalorder %s83, %s85
    %p89 = scmp.eq.s32.totalorder %s9, 0
    %p90 = por %p88, %p89
    %p91 = scmp.ne.s32.totalorder %s83, %s85
    %p92 = scmp.eq.s32.totalorder %s14, 3
    %p93 = por %p91, %p92
    %p94 = scmp.ne.s32.totalorder %s85, %s86
    %p95 = scmp.eq.s32.totalorder %s14, 0
    %p96 = por %p94, %p95
    %p97 = scmp.ne.s32.totalorder %s85, %s86
    %p98 = scmp.eq.s32.totalorder %s15, 3
    %p99 = por %p97, %p98
    %p101 = scmp.ne.s32.totalorder %s86, %s100
    %p102 = scmp.eq.s32.totalorder %s15, 0
    %p103 = por %p101, %p102
    %s104 = ssub.s32 %s16, %s28
    %s105 = ssub.s32 %s17, %s24
    %s106 = sor.u32 %s104, %s105
    %p107 = scmp.eq.s32.totalorder %s106, 0
    %s109 = sadd.s32 %s108, 1
    %s110 = scalar_select %p107, %s108, %s109
    %p113 = pneg %p107
    %p114 = scmp.eq.s32.totalorder %s9, 3
    %p115 = por %p113, %p114
    %p116 = scmp.ne.s32.totalorder %s108, %s111
    %p117 = scmp.eq.s32.totalorder %s9, 0
    %p118 = por %p116, %p117
    %p119 = scmp.ne.s32.totalorder %s108, %s111
    %p120 = scmp.eq.s32.totalorder %s14, 3
    %p121 = por %p119, %p120
    %p122 = scmp.ne.s32.totalorder %s111, %s112
    %p123 = scmp.eq.s32.totalorder %s14, 0
    %p124 = por %p122, %p123
    %p125 = scmp.ne.s32.totalorder %s111, %s112
    %p126 = scmp.eq.s32.totalorder %s15, 3
    %p127 = por %p125, %p126
    %p129 = scmp.ne.s32.totalorder %s112, %s128
    %p130 = scmp.eq.s32.totalorder %s15, 0
    %p131 = por %p129, %p130
    %p132 = scmp.le.s32.totalorder 1, %s9
    %p133 = scmp.lt.s32.totalorder %s9, 5
    %p134 = pnand %p132, %p133
    %p135 = pneg %p134
    // Predicated region
    $region9: #{tpu_custom_call.1} parent=5 // pred_check
      _
    $region10: #{tpu_custom_call.1} parent=5 // pred_check_branch
      %137 = sbr.rel (%p134) target = $region12
    $region11: #{tpu_custom_call.1} parent=5 // pred_region
      %s138 = ssub.s32 %s9, 1
      // Predicated region
      $region13: #{tpu_custom_call.1} parent=11 // pred_check
        %p139 = pneg %p96
      $region14: #{tpu_custom_call.1} parent=11 // pred_check_branch
        %141 = sbr.rel (%p139) target = $region16
      $region15: #{tpu_custom_call.1} parent=11 // pred_region
        _
      $region16: #{tpu_custom_call.1} parent=11 // pred_fallthru
        _
    $region12: #{tpu_custom_call.1} parent=5 // pred_fallthru
      _
    %p142 = scmp.lt.s32.totalorder %s9, 4
    // Predicated region
    $region17: #{tpu_custom_call.1} parent=5 // pred_check
      %p143 = pneg %p142
    $region18: #{tpu_custom_call.1} parent=5 // pred_check_branch
      %145 = sbr.rel (%p143) target = $region20
    $region19: #{tpu_custom_call.1} parent=5 // pred_region
      // Predicated region
      $region21: #{tpu_custom_call.1} parent=19 // pred_check
        %p146 = pneg %p41
      $region22: #{tpu_custom_call.1} parent=19 // pred_check_branch
        %148 = sbr.rel (%p146) target = $region24
      $region23: #{tpu_custom_call.1} parent=19 // pred_region
        %p149 = scmp.lt.s32.totalorder %s16, 1
        %s150 = scalar_select %p149, %s16, 1
        %s151 = smul.addr %s150, 4
        %s152 = scalar_lea.vmem %s0, %s151
      $region24: #{tpu_custom_call.1} parent=19 // pred_fallthru
        _
      // Predicated region
      $region25: #{tpu_custom_call.1} parent=19 // pred_check
        %p153 = pneg %p69
      $region26: #{tpu_custom_call.1} parent=19 // pred_check_branch
        %155 = sbr.rel (%p153) target = $region28
      $region27: #{tpu_custom_call.1} parent=19 // pred_region
        %p156 = scmp.lt.s32.totalorder %s16, 1
        %s157 = scalar_select %p156, %s16, 1
        %p158 = scmp.lt.s32.totalorder %s17, 1
        %s159 = scalar_select %p158, %s17, 1
        %s160 = smul.addr %s157, 2
        %s161 = sadd.s32 %s159, %s160
        %s162 = smul.addr %s161, 4
        %s163 = scalar_lea.vmem %s1, %s162
      $region28: #{tpu_custom_call.1} parent=19 // pred_fallthru
        _
    $region20: #{tpu_custom_call.1} parent=5 // pred_fallthru
      _
    %p164 = scmp.le.s32.totalorder 1, %s9
    %p165 = scmp.lt.s32.totalorder %s9, 5
    %p166 = pnand %p164, %p165
    %p167 = pneg %p166
    // Predicated region
    $region29: #{tpu_custom_call.1} parent=5 // pred_check
      _
    $region30: #{tpu_custom_call.1} parent=5 // pred_check_branch
      %169 = sbr.rel (%p166) target = $region32
    $region31: #{tpu_custom_call.1} parent=5 // pred_region
      %s170 = ssub.s32 %s9, 1
      %p171 = scmp.lt.s32.totalorder %s18, 1
      %s172 = scalar_select %p171, %s18, 1
      %s173 = smul.addr %s172, 4
      %s174 = scalar_lea.vmem %s0, %s173
      %p175 = pneg %p47
      %p176 = pneg %p44
      %p177 = scmp.lt.s32.totalorder %s18, 1
      %s178 = scalar_select %p177, %s18, 1
      %p179 = scmp.lt.s32.totalorder %s19, 1
      %s180 = scalar_select %p179, %s19, 1
      %s181 = smul.addr %s178, 2
      %s182 = sadd.s32 %s180, %s181
      %s183 = smul.addr %s182, 4
      %s184 = scalar_lea.vmem %s1, %s183
      %p185 = pneg %p75
      %p186 = pneg %p72
      %p187 = pneg %p96
      %p188 = pneg %p93
      %p189 = pneg %p124
      %p190 = pneg %p121
      %p191 = scmp.lt.s32.totalorder %s18, 1
      %s192 = scalar_select %p191, %s18, 1
      %p193 = scmp.lt.s32.totalorder %s19, 1
      %s194 = scalar_select %p193, %s19, 1
      %s195 = smul.addr %s192, 2
      %s196 = sadd.s32 %s194, %s195
      %s197 = smul.addr %s196, 4
      %s198 = scalar_lea.vmem %s3, %s197
      %p199 = scmp.lt.s32.totalorder %s18, 1
      %s200 = scalar_select %p199, %s18, 1
      %s201 = smul.addr %s200, 4
      %s202 = scalar_lea.vmem %s0, %s201
      %p203 = scmp.lt.s32.totalorder %s18, 1
      %s204 = scalar_select %p203, %s18, 1
      %p205 = scmp.lt.s32.totalorder %s19, 1
      %s206 = scalar_select %p205, %s19, 1
      %s207 = smul.addr %s204, 2
      %s208 = sadd.s32 %s206, %s207
      %s209 = smul.addr %s208, 4
      %s210 = scalar_lea.vmem %s1, %s209
      %p211 = scmp.lt.s32.totalorder %s18, 1
      %s212 = scalar_select %p211, %s18, 1
      %p213 = scmp.lt.s32.totalorder %s19, 1
      %s214 = scalar_select %p213, %s19, 1
      %s215 = smul.addr %s212, 2
      %s216 = sadd.s32 %s214, %s215
      %s217 = smul.addr %s216, 4
      %s218 = scalar_lea.vmem %s3, %s217
      %v219 = vld [vmem:[%s202] sm:$0x7]
      %v220 = vld [vmem:[%s210] sm:$0xf]
      %v221 = vld [vmem:[%s2] sm:$0x7]
      %223 = vset.pattern.permute.xlu0 0
      %224 = vperm.xlu0 %223, %v221
      %v225 = vpop.permute.xlu0 %224
      %vm227 = vcmask 31744
      %v229 = vsel %vm227, %v219, 0
      %vm231 = vcmask 1043456
      %v233 = vsel %vm231, %v220, 0
      %235 = vmatprep.subr.mxu0 0.0
      %236 = vmatpush1.msra.mxu0 %v233
      %237 = vmatprep.subr.mxu0 0.0
      %238 = vmatpush1.msra.mxu0 0.0
      %239 = vmatprep.subr.mxu0 0.0
      %240 = vmatpush1.msra.mxu0 0.0
      %241 = vmatprep.subr.mxu0 0.0
      %242 = vmatpush1.msra.mxu0 0.0
      %243 = vmatprep.subr.mxu0 0.0
      %244 = vmatpush1.msra.mxu0 0.0
      %245 = vmatprep.subr.mxu0 0.0
      %246 = vmatpush1.msra.mxu0 0.0
      %247 = vmatprep.subr.mxu0 0.0
      %248 = vmatpush1.msra.mxu0 0.0
      %249 = vmatprep.subr.mxu0 0.0
      %250 = vmatpush1.msra.mxu0 0.0
      %251 = vmatprep.subr.mxu0 0.0
      %252 = vmatpush1.msra.mxu0 0.0
      %253 = vmatprep.subr.mxu0 0.0
      %254 = vmatpush1.msra.mxu0 0.0
      %255 = vmatprep.subr.mxu0 0.0
      %256 = vmatpush1.msra.mxu0 0.0
      %257 = vmatprep.subr.mxu0 0.0
      %258 = vmatpush1.msra.mxu0 0.0
      %259 = vmatprep.subr.mxu0 0.0
      %260 = vmatpush1.msra.mxu0 0.0
      %261 = vmatprep.subr.mxu0 0.0
      %262 = vmatpush1.msra.mxu0 0.0
      %263 = vmatprep.subr.mxu0 0.0
      %264 = vmatpush1.msra.mxu0 0.0
      %265 = vmatprep.subr.mxu0 0.0
      %266 = vmatpush1.msra.mxu0 0.0
      %267 = vmatprep.subr.mxu0 0.0
      %268 = vmatpush1.msra.mxu0 0.0
      %269 = vmatprep.subr.mxu0 0.0
      %270 = vmatpush1.msra.mxu0 0.0
      %271 = vmatprep.subr.mxu0 0.0
      %272 = vmatpush1.msra.mxu0 0.0
      %273 = vmatprep.subr.mxu0 0.0
      %274 = vmatpush1.msra.mxu0 0.0
      %275 = vmatprep.subr.mxu0 0.0
      %276 = vmatpush1.msra.mxu0 0.0
      %277 = vmatprep.subr.mxu0 0.0
      %278 = vmatpush1.msra.mxu0 0.0
      %279 = vmatprep.subr.mxu0 0.0
      %280 = vmatpush1.msra.mxu0 0.0
      %281 = vmatprep.subr.mxu0 0.0
      %282 = vmatpush1.msra.mxu0 0.0
      %283 = vmatprep.subr.mxu0 0.0
      %284 = vmatpush1.msra.mxu0 0.0
      %285 = vmatprep.subr.mxu0 0.0
      %286 = vmatpush1.msra.mxu0 0.0
      %287 = vmatprep.subr.mxu0 0.0
      %288 = vmatpush1.msra.mxu0 0.0
      %289 = vmatprep.subr.mxu0 0.0
      %290 = vmatpush1.msra.mxu0 0.0
      %291 = vmatprep.subr.mxu0 0.0
      %292 = vmatpush1.msra.mxu0 0.0
      %293 = vmatprep.subr.mxu0 0.0
      %294 = vmatpush1.msra.mxu0 0.0
      %295 = vmatprep.subr.mxu0 0.0
      %296 = vmatpush1.msra.mxu0 0.0
      %297 = vmatprep.subr.mxu0 0.0
      %298 = vmatpush1.msra.mxu0 0.0
      %299 = vmatprep.mubr.f32.mxu0 0.0
      %300 = vmatmul.mubr.f32.gmra.mrb[0].mxu0 %v229
      %v301 = vpop.f32.mrb[0].mxu0
      %v302 = vadd.f32 %v225, %v301
      %v303 = vpop.f32.mrb[0].mxu0
      %304 = vdwg.mxu0
      %305 = vst [vmem:[%s218] sm:$0x7] %v302
      %p306 = scmp.lt.s32.totalorder %s18, 1
      %s307 = scalar_select %p306, %s18, 1
      %p308 = scmp.lt.s32.totalorder %s19, 1
      %s309 = scalar_select %p308, %s19, 1
      %s310 = smul.addr %s307, 2
      %s311 = sadd.s32 %s309, %s310
      %s312 = smul.addr %s311, 4
      %s313 = scalar_lea.vmem %s3, %s312
      // Predicated region
      $region33: #{tpu_custom_call.1} parent=31 // pred_check
        %p314 = pneg %p121
      $region34: #{tpu_custom_call.1} parent=31 // pred_check_branch
        %316 = sbr.rel (%p314) target = $region36
      $region35: #{tpu_custom_call.1} parent=31 // pred_region
        _
      $region36: #{tpu_custom_call.1} parent=31 // pred_fallthru
        _
    $region32: #{tpu_custom_call.1} parent=5 // pred_fallthru
      _
    %p317 = scmp.le.s32.totalorder 2, %s9
    // Predicated region
    $region37: #{tpu_custom_call.1} parent=5 // pred_check
      %p318 = pneg %p317
    $region38: #{tpu_custom_call.1} parent=5 // pred_check_branch
      %320 = sbr.rel (%p318) target = $region40
    $region39: #{tpu_custom_call.1} parent=5 // pred_region
      %s321 = ssub.s32 %s9, 2
      // Predicated region
      $region41: #{tpu_custom_call.1} parent=39 // pred_check
        %p322 = pneg %p127
      $region42: #{tpu_custom_call.1} parent=39 // pred_check_branch
        %324 = sbr.rel (%p322) target = $region44
      $region43: #{tpu_custom_call.1} parent=39 // pred_region
        %p325 = scmp.lt.s32.totalorder %s20, 1
        %s326 = scalar_select %p325, %s20, 1
        %p327 = scmp.lt.s32.totalorder %s21, 1
        %s328 = scalar_select %p327, %s21, 1
        %s329 = smul.addr %s326, 2
        %s330 = sadd.s32 %s328, %s329
        %s331 = smul.addr %s330, 4
        %s332 = scalar_lea.vmem %s3, %s331
      $region44: #{tpu_custom_call.1} parent=39 // pred_fallthru
        _
    $region40: #{tpu_custom_call.1} parent=5 // pred_fallthru
      _
  $region6: #{tpu_custom_call.1} parent=0 // loop_footer
    %s13 = sadd.s32 1, %s9
  $region7: #{tpu_custom_call.1} parent=0 // loop_footer_branch
    %8 = sbr.rel target = $region3
  $region8: #{tpu_custom_call.1} parent=0 // loop_exit
    _

</llo_original>
